<compile_context>
chip_gen: v5e
topology: v5e:2x2
jax: 0.10.0
libtpu: 0.0.40
codegen_flags: <defaults>
</compile_context>

<pallas_src>
import functools
import math

import jax
import jax.numpy as jnp
import numpy as np
from jax import lax
from jax.experimental import pallas as pl
from jax.experimental.pallas import tpu as pltpu


# ---------------------------------------------------------------------------
# Generation-aware sizing helpers
# ---------------------------------------------------------------------------
def _vmem_limit_bytes():
    """~3/4 of physical VMEM (v5e/v6e -> 96 MiB, v7x -> 48 MiB), cap 100 MiB."""
    try:
        cap = int(pltpu.get_tpu_info().vmem_capacity_bytes)
    except Exception:
        cap = 64 * 1024 * 1024          # conservative fallback (v7x-sized)
    return min((cap * 3) // 4, 100 * 1024 * 1024)


def _softmax_exp_dtype():
    """bf16 exp on chips with a bf16 EUP (v6e/v7x); fp32 elsewhere (v5e)."""
    try:
        kind = jax.devices()[0].device_kind.lower()
    except Exception:
        return jnp.float32
    if ("v6" in kind) or ("v7" in kind) or ("tpu7" in kind):
        return jnp.bfloat16
    return jnp.float32


def _pick_head_block(n_heads, d_k):
    """Smallest head group whose fused lane width hb*d_k is a multiple of 128
    (lane-dense q/k/v/ctx blocks); fall back to all heads (full d_model)."""
    for hb in range(1, n_heads):
        if n_heads % hb == 0 and (hb * d_k) % 128 == 0:
            return hb
    return n_heads


def _divisor_tiles(n, candidates):
    return [t for t in candidates if t <= n and n % t == 0]


def _pick_qkv_tile(L, D, n_x, x_itemsize, vmem_limit):
    cands = _divisor_tiles(L, (1024, 512, 256, 128)) or [L]
    for tl in cands:
        est = (n_x * 2 * tl * D * x_itemsize            # x inputs (double buffered)
               + 2 * (D * 3 * D * 2 + 3 * D * 4)        # fused weight + bias
               + 3 * 2 * tl * D * 2                     # q/k/v outputs (bf16)
               + 4 * tl * 3 * D * 4)                    # fp32 matmul temporaries
        if est <= int(vmem_limit * 0.8):
            return tl
    return cands[-1]


def _pick_attn_tile(L, hb, d_k, D, vmem_limit, has_mask, return_attn):
    hbd = hb * d_k
    cands = _divisor_tiles(L, (1024, 512, 256, 128)) or [L]
    for tq in cands:
        est = (2 * tq * hbd * 2                               # q blocks (bf16)
               + 2 * 2 * L * hbd * 2                          # k, v blocks (bf16)
               + (2 * tq * L if has_mask else 0)              # int8 mask
               + (2 * hb * tq * L * 2 if return_attn else 0)  # attn out (bf16)
               + 2 * tq * D * 4                               # out blocks (fp32)
               + 2 * (D * D * 2 + D * 4)                      # resident Wo, bo
               + tq * D * 2                                   # ctx buffer
               + 8 * tq * L * 4)                              # fp32 softmax temps
        if est <= int(vmem_limit * 0.8):
            return tq
    return cands[-1]


def _ensure_two_parallel(B, L, t):
    """Keep >= 2 parallel grid units so v7x's two TensorCores both get work."""
    if B * (L // t) >= 2:
        return t
    for cand in (t // 2, t // 4):
        if cand >= 8 and cand % 8 == 0 and L % cand == 0:
            return cand
    return t


# ---------------------------------------------------------------------------
# Kernel 1a: fused Q/K/V projection, self-attention (shared x)
# ---------------------------------------------------------------------------
def _qkv_proj_self_kernel(x_ref, w_ref, b_ref, q_ref, k_ref, v_ref, *,
                          d_model, compute_dtype):
    D = d_model
    x = x_ref[0].astype(compute_dtype)                          # (tl, D) bf16
    y = jnp.dot(x, w_ref[...],                                  # (tl, 3D), one MXU stream
                preferred_element_type=jnp.float32)
    y = y + b_ref[...]                                          # (1, 3D) fp32 bias
    q_ref[0] = y[:, :D].astype(q_ref.dtype)
    k_ref[0] = y[:, D:2 * D].astype(k_ref.dtype)
    v_ref[0] = y[:, 2 * D:].astype(v_ref.dtype)


# ---------------------------------------------------------------------------
# Kernel 1b: fused Q/K/V projection, cross-attention (distinct xq/xk/xv)
# ---------------------------------------------------------------------------
def _qkv_proj_kernel(xq_ref, xk_ref, xv_ref, w_ref, b_ref,
                     q_ref, k_ref, v_ref, *, d_model, compute_dtype):
    D = d_model

    def proj(x_ref, lo, o_ref):
        x = x_ref[0].astype(compute_dtype)                      # (tl, D) bf16
        y = jnp.dot(x, w_ref[:, lo:lo + D],                     # full-width (D, D) slice
                    preferred_element_type=jnp.float32)
        o_ref[0] = (y + b_ref[:, lo:lo + D]).astype(o_ref.dtype)

    proj(xq_ref, 0, q_ref)
    proj(xk_ref, D, k_ref)
    proj(xv_ref, 2 * D, v_ref)


# ---------------------------------------------------------------------------
# Kernel 2: attention core + deferred full-width output projection
# ---------------------------------------------------------------------------
def _attn_kernel(*refs, hb, d_k, n_groups, has_mask, return_attn,
                 exp_dtype, compute_dtype):
    i = 0
    if has_mask:
        mask_ref = refs[i]; i += 1
    q_ref, k_ref, v_ref, wo_ref, bo_ref = refs[i:i + 5]; i += 5
    out_ref = refs[i]; i += 1
    attn_ref = None
    if return_attn:
        attn_ref = refs[i]; i += 1
    ctx_ref = refs[i] if n_groups > 1 else None

    hbd = hb * d_k
    q = q_ref[0]                       # (tq, hbd) bf16 (already scaled via fused Wq)
    k = k_ref[0]                       # (L,  hbd) bf16
    v = v_ref[0]                       # (L,  hbd) bf16

    if has_mask:
        neg_mask = mask_ref[0, 0] == 0     # int8 compared directly, once per tile

    ctx_cols = []
    for j in range(hb):                # static loop over heads in this group
        lo = j * d_k
        qj = q[:, lo:lo + d_k]
        kj = k[:, lo:lo + d_k]
        vj = v[:, lo:lo + d_k]

        # scores = qj @ kj^T without materializing the transpose.
        s = lax.dot_general(qj, kj, (((1,), (1,)), ((), ())),
                            preferred_element_type=jnp.float32)     # (tq, L) fp32
        if has_mask:
            # masked_fill(mask == 0, -inf); fully masked rows -> NaN (as PyTorch)
            s = jnp.where(neg_mask, -jnp.inf, s)

        row_max = jnp.max(s, axis=-1, keepdims=True)                 # fp32
        e = jnp.exp((s - row_max).astype(exp_dtype))                 # bf16 on v6e/v7x
        denom = jnp.sum(e.astype(jnp.float32), axis=-1, keepdims=True)
        inv = pl.reciprocal(denom, approx=True)                      # EUP; approx norm
        attn_c = (e * inv.astype(e.dtype)).astype(compute_dtype)     # single bf16 value

        if return_attn:
            attn_ref[0, j] = attn_c.astype(attn_ref.dtype)
        # TODO(synk): Dropout(p=0.1) on attn is identity (eval-mode semantics).

        ctx_cols.append(jnp.dot(attn_c, vj,                          # (tq, d_k) fp32
                                preferred_element_type=jnp.float32))

    ctx_group = ctx_cols[0] if hb == 1 else jnp.concatenate(ctx_cols, axis=-1)

    if n_groups == 1:
        # All heads in one step: project directly, one (tq, D) @ (D, D) matmul.
        y = jnp.dot(ctx_group.astype(compute_dtype), wo_ref[...],
                    preferred_element_type=jnp.float32)
        out_ref[0] = (y + bo_ref[...]).astype(out_ref.dtype)
    else:
        g = pl.program_id(2)
        col0 = pl.multiple_of(g * hbd, hbd)            # 128-aligned column offset
        ctx_ref[:, pl.ds(col0, hbd)] = ctx_group.astype(ctx_ref.dtype)

        @pl.when(g == n_groups - 1)
        def _():
            # Deferred full-width projection: ONE K=D matmul against resident Wo.
            y = jnp.dot(ctx_ref[...], wo_ref[...],
                        preferred_element_type=jnp.float32)
            out_ref[0] = (y + bo_ref[...]).astype(out_ref.dtype)


# ---------------------------------------------------------------------------
# Wrapper
# ---------------------------------------------------------------------------
def multi_head_attention(xq, xk, xv, params, n_heads, mask=None, *,
                         return_attn=True,
                         compute_dtype=jnp.bfloat16,
                         attn_dtype=jnp.bfloat16,
                         exp_dtype=None):
    """Pallas MHA forward.

    Returns (out (B, L, D) fp32, attn (B, H, L, L) attn_dtype or None).
    NOTE: attention probabilities are returned in bf16 by default and use an
    approximate reciprocal, so rows sum to ~1 (within ~1e-3), not exactly 1.
    """
    B, L, D = xq.shape
    H = n_heads
    assert D % H == 0
    d_k = D // H

    Wq, bq, Wk, bk, Wv, bv, Wo, bo = params
    scale = 1.0 / math.sqrt(d_k)

    # One-time weight re-layout: fused (D, 3D) QKV weight with 1/sqrt(d_k)
    # folded into the Q columns (deletes the per-tile score scaling).
    w_fused = jnp.concatenate([Wq.T * scale, Wk.T, Wv.T], axis=1).astype(compute_dtype)
    b_fused = jnp.concatenate([bq * scale, bk, bv], axis=0).reshape(1, 3 * D)
    b_fused = b_fused.astype(jnp.float32)
    wo_t = Wo.T.astype(compute_dtype)                   # (D, D), head-major rows
    bo_2 = bo.reshape(1, D).astype(jnp.float32)

    has_mask = mask is not None
    if has_mask:
        if mask.dtype != jnp.int8:
            mask = (mask != 0).astype(jnp.int8)         # 4x less HBM than fp32
        mask = jnp.broadcast_to(mask, (B, 1, L, L))

    if exp_dtype is None:
        exp_dtype = _softmax_exp_dtype()

    vmem_limit = _vmem_limit_bytes()
    is_self = (xq is xk) and (xq is xv)

    # ---- 1) fused full-width Q/K/V projections --------------------------------
    tl = _pick_qkv_tile(L, D, 1 if is_self else 3, xq.dtype.itemsize, vmem_limit)
    tl = _ensure_two_parallel(B, L, tl)

    x_spec = pl.BlockSpec((1, tl, D), lambda b, r: (b, r, 0))
    w_spec = pl.BlockSpec((D, 3 * D), lambda b, r: (0, 0))      # resident
    b_spec = pl.BlockSpec((1, 3 * D), lambda b, r: (0, 0))      # resident
    o_spec = pl.BlockSpec((1, tl, D), lambda b, r: (b, r, 0))
    qkv_struct = jax.ShapeDtypeStruct((B, L, D), compute_dtype)

    if is_self:
        qkv_kernel = functools.partial(_qkv_proj_self_kernel,
                                       d_model=D, compute_dtype=compute_dtype)
        qkv_in_specs = [x_spec, w_spec, b_spec]
        qkv_args = (xq, w_fused, b_fused)
    else:
        qkv_kernel = functools.partial(_qkv_proj_kernel,
                                       d_model=D, compute_dtype=compute_dtype)
        qkv_in_specs = [x_spec, x_spec, x_spec, w_spec, b_spec]
        qkv_args = (xq, xk, xv, w_fused, b_fused)

    q, k, v = pl.pallas_call(
        qkv_kernel,
        out_shape=(qkv_struct, qkv_struct, qkv_struct),
        grid_spec=pltpu.PrefetchScalarGridSpec(
            num_scalar_prefetch=0,
            grid=(B, L // tl),
            in_specs=qkv_in_specs,
            out_specs=[o_spec, o_spec, o_spec],
        ),
        compiler_params=pltpu.CompilerParams(
            dimension_semantics=("parallel", "parallel"),
            vmem_limit_bytes=vmem_limit),
    )(*qkv_args)

    # ---- 2) attention + deferred output projection -----------------------------
    # Per-head-group slabs are read straight from the (B, L, D) projections (no
    # XLA reshape/transpose round trip).
    hb = _pick_head_block(H, d_k)
    hbd = hb * d_k
    G = H // hb

    tq = _pick_attn_tile(L, hb, d_k, D, vmem_limit, has_mask, return_attn)
    tq = _ensure_two_parallel(B, L, tq)
    R = L // tq

    q_spec = pl.BlockSpec((1, tq, hbd), lambda b, r, g: (b, r, g))
    kv_spec = pl.BlockSpec((1, L, hbd), lambda b, r, g: (b, 0, g))
    wo_spec = pl.BlockSpec((D, D), lambda b, r, g: (0, 0))       # resident full Wo
    bo_spec = pl.BlockSpec((1, D), lambda b, r, g: (0, 0))       # resident

    attn_in_specs = []
    attn_args = []
    if has_mask:
        attn_in_specs.append(pl.BlockSpec((1, 1, tq, L), lambda b, r, g: (b, 0, r, 0)))
        attn_args.append(mask)
    attn_in_specs += [q_spec, kv_spec, kv_spec, wo_spec, bo_spec]
    attn_args += [q, k, v, wo_t, bo_2]

    out_specs = [pl.BlockSpec((1, tq, D), lambda b, r, g: (b, r, 0))]   # acc over g
    out_shapes = [jax.ShapeDtypeStruct((B, L, D), jnp.float32)]
    if return_attn:
        out_specs.append(pl.BlockSpec((1, hb, tq, L), lambda b, r, g: (b, g, r, 0)))
        out_shapes.append(jax.ShapeDtypeStruct((B, H, L, L), attn_dtype))

    scratch = [pltpu.VMEM((tq, D), compute_dtype)] if G > 1 else []

    results = pl.pallas_call(
        functools.partial(_attn_kernel, hb=hb, d_k=d_k, n_groups=G,
                          has_mask=has_mask, return_attn=return_attn,
                          exp_dtype=exp_dtype, compute_dtype=compute_dtype),
        out_shape=tuple(out_shapes),
        grid_spec=pltpu.PrefetchScalarGridSpec(
            num_scalar_prefetch=0,
            grid=(B, R, G),
            in_specs=attn_in_specs,
            out_specs=out_specs,
            scratch_shapes=scratch,
        ),
        compiler_params=pltpu.CompilerParams(
            dimension_semantics=("parallel", "parallel", "arbitrary"),
            vmem_limit_bytes=vmem_limit),
    )(*attn_args)

    out = results[0]
    attn = results[1] if return_attn else None
    return out, attn


# ---------------------------------------------------------------------------
# Pure-JAX reference (fp32, mirrors the PyTorch forward in eval mode)
# ---------------------------------------------------------------------------
def _ref_mha(xq, xk, xv, params, n_heads, mask=None):
    Wq, bq, Wk, bk, Wv, bv, Wo, bo = params
    B, L, D = xq.shape
    H = n_heads
    d_k = D // H
    q = (xq @ Wq.T + bq).reshape(B, L, H, d_k).transpose(0, 2, 1, 3)
    k = (xk @ Wk.T + bk).reshape(B, L, H, d_k).transpose(0, 2, 1, 3)
    v = (xv @ Wv.T + bv).reshape(B, L, H, d_k).transpose(0, 2, 1, 3)
    qk = jnp.einsum("bhld,bhmd->bhlm", q, k) / math.sqrt(d_k)
    if mask is not None:
        qk = jnp.where(mask == 0, -jnp.inf, qk)
    attn = jax.nn.softmax(qk, axis=-1)
    out = jnp.einsum("bhlm,bhmd->bhld", attn, v)
    out = out.transpose(0, 2, 1, 3).reshape(B, L, D)
    out = out @ Wo.T + bo
    return out, attn


if __name__ == "__main__":
    B, L, d_model, n_heads = 2, 8, 32, 4

    key = jax.random.PRNGKey(0)
    keys = jax.random.split(key, 12)
    wscale = 1.0 / math.sqrt(d_model)

    # Deterministic synthetic parameters (PyTorch Linear: weight (D,D), bias (D,))
    Wq = jax.random.normal(keys[0], (d_model, d_model), jnp.float32) * wscale
    bq = jax.random.normal(keys[1], (d_model,), jnp.float32) * 0.1
    Wk = jax.random.normal(keys[2], (d_model, d_model), jnp.float32) * wscale
    bk = jax.random.normal(keys[3], (d_model,), jnp.float32) * 0.1
    Wv = jax.random.normal(keys[4], (d_model, d_model), jnp.float32) * wscale
    bv = jax.random.normal(keys[5], (d_model,), jnp.float32) * 0.1
    Wo = jax.random.normal(keys[6], (d_model, d_model), jnp.float32) * wscale
    bo = jax.random.normal(keys[7], (d_model,), jnp.float32) * 0.1
    params = (Wq, bq, Wk, bk, Wv, bv, Wo, bo)

    xq = jax.random.normal(keys[8], (B, L, d_model), jnp.float32)
    xk = jax.random.normal(keys[9], (B, L, d_model), jnp.float32)
    xv = jax.random.normal(keys[10], (B, L, d_model), jnp.float32)

    # Causal mask, broadcast over heads, stored as int8: (B, 1, L, L)
    mask = jnp.broadcast_to(jnp.tril(jnp.ones((L, L), jnp.int8)), (B, 1, L, L))

    # 1) masked cross-attention, with attention probabilities
    out, attn = multi_head_attention(xq, xk, xv, params, n_heads, mask=mask)
    jax.block_until_ready((out, attn))

    out_ref, attn_ref = _ref_mha(xq, xk, xv, params, n_heads, mask)
    # bf16 matmul operands / bf16 attn output / approx reciprocal -> relaxed tol.
    np.testing.assert_allclose(np.asarray(out), np.asarray(out_ref),
                               rtol=5e-2, atol=5e-2)
    np.testing.assert_allclose(np.asarray(attn.astype(jnp.float32)),
                               np.asarray(attn_ref), rtol=5e-2, atol=5e-2)

    # 2) unmasked self-attention without the attention-probability output
    #    (exercises the fused single-matmul QKV path and the maskless kernel).
    out2, attn2 = multi_head_attention(xq, xq, xq, params, n_heads,
                                       mask=None, return_attn=False)
    jax.block_until_ready(out2)
    assert attn2 is None
    out2_ref, _ = _ref_mha(xq, xq, xq, params, n_heads, None)
    np.testing.assert_allclose(np.asarray(out2), np.asarray(out2_ref),
                               rtol=5e-2, atol=5e-2)

    print("KERNEL_OK")
</pallas_src>

<mosaic_0001>
module attributes {stable_mosaic.version = 11 : i64} {
  func.func @_qkv_proj_kernel(%arg0: i32, %arg1: i32, %arg2: memref<1x8x32xf32, #tpu.memory_space<vmem>>, %arg3: memref<1x8x32xf32, #tpu.memory_space<vmem>>, %arg4: memref<1x8x32xf32, #tpu.memory_space<vmem>>, %arg5: memref<32x96xbf16, #tpu.memory_space<vmem>>, %arg6: memref<1x96xf32, #tpu.memory_space<vmem>>, %arg7: memref<1x8x32xbf16, #tpu.memory_space<vmem>>, %arg8: memref<1x8x32xbf16, #tpu.memory_space<vmem>>, %arg9: memref<1x8x32xbf16, #tpu.memory_space<vmem>>) attributes {dimension_semantics = [#tpu.dimension_semantics<parallel>, #tpu.dimension_semantics<parallel>], iteration_bounds = array<i64: 2, 1>, scalar_prefetch = 0 : i64, scratch_operands = 0 : i64, tpu.core_type = #tpu.core_type<tc>, window_params = [{transform_indices = @transform_0, window_bounds = array<i64: 1, 8, 32>}, {transform_indices = @transform_1, window_bounds = array<i64: 1, 8, 32>}, {transform_indices = @transform_2, window_bounds = array<i64: 1, 8, 32>}, {pipeline_mode = #tpu.pipeline_mode<synchronous>, transform_indices = @transform_3, window_bounds = array<i64: 32, 96>}, {pipeline_mode = #tpu.pipeline_mode<synchronous>, transform_indices = @transform_4, window_bounds = array<i64: 1, 96>}, {transform_indices = @transform_5, window_bounds = array<i64: 1, 8, 32>}, {transform_indices = @transform_6, window_bounds = array<i64: 1, 8, 32>}, {transform_indices = @transform_7, window_bounds = array<i64: 1, 8, 32>}]} {
    %c0 = arith.constant 0 : index
    %c0_0 = arith.constant 0 : index
    %c0_1 = arith.constant 0 : index
    %0 = vector.load %arg2[%c0, %c0_0, %c0_1] : memref<1x8x32xf32, #tpu.memory_space<vmem>>, vector<1x8x32xf32>
    %1 = vector.shape_cast %0 : vector<1x8x32xf32> to vector<8x32xf32>
    %2 = arith.truncf %1 : vector<8x32xf32> to vector<8x32xbf16>
    %c0_2 = arith.constant 0 : index
    %c0_3 = arith.constant 0 : index
    %3 = vector.load %arg5[%c0_2, %c0_3] : memref<32x96xbf16, #tpu.memory_space<vmem>>, vector<32x32xbf16>
    %cst = arith.constant dense<0.000000e+00> : vector<8x32xf32>
    %4 = tpu.matmul %2, %3, %cst {dimension_numbers = #tpu.dot_dimension_numbers<[1], [0], [0], [1], [0, 0, 1, 1], [], []>} : vector<8x32xbf16>, vector<32x32xbf16>, vector<8x32xf32> -> vector<8x32xf32>
    %c0_4 = arith.constant 0 : index
    %c0_5 = arith.constant 0 : index
    %5 = vector.load %arg6[%c0_4, %c0_5] : memref<1x96xf32, #tpu.memory_space<vmem>>, vector<1x32xf32>
    %6 = vector.broadcast %5 : vector<1x32xf32> to vector<8x32xf32>
    %7 = arith.addf %4, %6 : vector<8x32xf32>
    %8 = arith.truncf %7 : vector<8x32xf32> to vector<8x32xbf16>
    %c0_6 = arith.constant 0 : index
    %c0_7 = arith.constant 0 : index
    %c0_8 = arith.constant 0 : index
    %9 = vector.load %arg7[%c0_6, %c0_7, %c0_8] : memref<1x8x32xbf16, #tpu.memory_space<vmem>>, vector<1x8x32xbf16>
    %10 = vector.shape_cast %9 : vector<1x8x32xbf16> to vector<8x32xbf16>
    %11 = vector.shape_cast %8 : vector<8x32xbf16> to vector<1x8x32xbf16>
    tpu.vector_store %arg7[%c0_6, %c0_7, %c0_8], %11 {strides = array<i32>} : memref<1x8x32xbf16, #tpu.memory_space<vmem>>, vector<1x8x32xbf16>,
    %c0_9 = arith.constant 0 : index
    %c0_10 = arith.constant 0 : index
    %c0_11 = arith.constant 0 : index
    %12 = vector.load %arg3[%c0_9, %c0_10, %c0_11] : memref<1x8x32xf32, #tpu.memory_space<vmem>>, vector<1x8x32xf32>
    %13 = vector.shape_cast %12 : vector<1x8x32xf32> to vector<8x32xf32>
    %14 = arith.truncf %13 : vector<8x32xf32> to vector<8x32xbf16>
    %c0_12 = arith.constant 0 : index
    %c32 = arith.constant 32 : index
    %15 = vector.load %arg5[%c0_12, %c32] : memref<32x96xbf16, #tpu.memory_space<vmem>>, vector<32x32xbf16>
    %cst_13 = arith.constant dense<0.000000e+00> : vector<8x32xf32>
    %16 = tpu.matmul %14, %15, %cst_13 {dimension_numbers = #tpu.dot_dimension_numbers<[1], [0], [0], [1], [0, 0, 1, 1], [], []>} : vector<8x32xbf16>, vector<32x32xbf16>, vector<8x32xf32> -> vector<8x32xf32>
    %c0_14 = arith.constant 0 : index
    %c32_15 = arith.constant 32 : index
    %17 = vector.load %arg6[%c0_14, %c32_15] : memref<1x96xf32, #tpu.memory_space<vmem>>, vector<1x32xf32>
    %18 = vector.broadcast %17 : vector<1x32xf32> to vector<8x32xf32>
    %19 = arith.addf %16, %18 : vector<8x32xf32>
    %20 = arith.truncf %19 : vector<8x32xf32> to vector<8x32xbf16>
    %c0_16 = arith.constant 0 : index
    %c0_17 = arith.constant 0 : index
    %c0_18 = arith.constant 0 : index
    %21 = vector.load %arg8[%c0_16, %c0_17, %c0_18] : memref<1x8x32xbf16, #tpu.memory_space<vmem>>, vector<1x8x32xbf16>
    %22 = vector.shape_cast %21 : vector<1x8x32xbf16> to vector<8x32xbf16>
    %23 = vector.shape_cast %20 : vector<8x32xbf16> to vector<1x8x32xbf16>
    tpu.vector_store %arg8[%c0_16, %c0_17, %c0_18], %23 {strides = array<i32>} : memref<1x8x32xbf16, #tpu.memory_space<vmem>>, vector<1x8x32xbf16>,
    %c0_19 = arith.constant 0 : index
    %c0_20 = arith.constant 0 : index
    %c0_21 = arith.constant 0 : index
    %24 = vector.load %arg4[%c0_19, %c0_20, %c0_21] : memref<1x8x32xf32, #tpu.memory_space<vmem>>, vector<1x8x32xf32>
    %25 = vector.shape_cast %24 : vector<1x8x32xf32> to vector<8x32xf32>
    %26 = arith.truncf %25 : vector<8x32xf32> to vector<8x32xbf16>
    %c0_22 = arith.constant 0 : index
    %c64 = arith.constant 64 : index
    %27 = vector.load %arg5[%c0_22, %c64] : memref<32x96xbf16, #tpu.memory_space<vmem>>, vector<32x32xbf16>
    %cst_23 = arith.constant dense<0.000000e+00> : vector<8x32xf32>
    %28 = tpu.matmul %26, %27, %cst_23 {dimension_numbers = #tpu.dot_dimension_numbers<[1], [0], [0], [1], [0, 0, 1, 1], [], []>} : vector<8x32xbf16>, vector<32x32xbf16>, vector<8x32xf32> -> vector<8x32xf32>
    %c0_24 = arith.constant 0 : index
    %c64_25 = arith.constant 64 : index
    %29 = vector.load %arg6[%c0_24, %c64_25] : memref<1x96xf32, #tpu.memory_space<vmem>>, vector<1x32xf32>
    %30 = vector.broadcast %29 : vector<1x32xf32> to vector<8x32xf32>
    %31 = arith.addf %28, %30 : vector<8x32xf32>
    %32 = arith.truncf %31 : vector<8x32xf32> to vector<8x32xbf16>
    %c0_26 = arith.constant 0 : index
    %c0_27 = arith.constant 0 : index
    %c0_28 = arith.constant 0 : index
    %33 = vector.load %arg9[%c0_26, %c0_27, %c0_28] : memref<1x8x32xbf16, #tpu.memory_space<vmem>>, vector<1x8x32xbf16>
    %34 = vector.shape_cast %33 : vector<1x8x32xbf16> to vector<8x32xbf16>
    %35 = vector.shape_cast %32 : vector<8x32xbf16> to vector<1x8x32xbf16>
    tpu.vector_store %arg9[%c0_26, %c0_27, %c0_28], %35 {strides = array<i32>} : memref<1x8x32xbf16, #tpu.memory_space<vmem>>, vector<1x8x32xbf16>,
    return
  }
  func.func @transform_0(%arg0: i32, %arg1: i32) -> (i32, i32, i32) {
    %c0_i32 = arith.constant 0 : i32
    %c0_i32_0 = arith.constant 0 : i32
    return %arg0, %arg1, %c0_i32 : i32, i32, i32
  }
  func.func @transform_1(%arg0: i32, %arg1: i32) -> (i32, i32, i32) {
    %c0_i32 = arith.constant 0 : i32
    %c0_i32_0 = arith.constant 0 : i32
    return %arg0, %arg1, %c0_i32 : i32, i32, i32
  }
  func.func @transform_2(%arg0: i32, %arg1: i32) -> (i32, i32, i32) {
    %c0_i32 = arith.constant 0 : i32
    %c0_i32_0 = arith.constant 0 : i32
    return %arg0, %arg1, %c0_i32 : i32, i32, i32
  }
  func.func @transform_3(%arg0: i32, %arg1: i32) -> (i32, i32) {
    %c0_i32 = arith.constant 0 : i32
    %c0_i32_0 = arith.constant 0 : i32
    %c0_i32_1 = arith.constant 0 : i32
    return %c0_i32, %c0_i32_0 : i32, i32
  }
  func.func @transform_4(%arg0: i32, %arg1: i32) -> (i32, i32) {
    %c0_i32 = arith.constant 0 : i32
    %c0_i32_0 = arith.constant 0 : i32
    %c0_i32_1 = arith.constant 0 : i32
    return %c0_i32, %c0_i32_0 : i32, i32
  }
  func.func @transform_5(%arg0: i32, %arg1: i32) -> (i32, i32, i32) {
    %c0_i32 = arith.constant 0 : i32
    %c0_i32_0 = arith.constant 0 : i32
    return %arg0, %arg1, %c0_i32 : i32, i32, i32
  }
  func.func @transform_6(%arg0: i32, %arg1: i32) -> (i32, i32, i32) {
    %c0_i32 = arith.constant 0 : i32
    %c0_i32_0 = arith.constant 0 : i32
    return %arg0, %arg1, %c0_i32 : i32, i32, i32
  }
  func.func @transform_7(%arg0: i32, %arg1: i32) -> (i32, i32, i32) {
    %c0_i32 = arith.constant 0 : i32
    %c0_i32_0 = arith.constant 0 : i32
    return %arg0, %arg1, %c0_i32 : i32, i32, i32
  }
}

</mosaic_0001>

<llo_original>
// kernel: tpu_custom_call.1
$region0: #{tpu_custom_call.1}
  #allocation0 [shape = 'u32[]', space=smem, size = 0x4, offset = 0x4, fixed_abs, tag = 'smem constant byte address 0x4 - core index']
  #allocation1 [shape = 'u32[72,128]{1,0:T(1,128)}', space=vmem, size = 0x9000, scoped, tag = 'internal scratch']
  %s0 = inlined_call_operand.hbm [shape: f32[2,8,32], index: 0, kind: input, shape index: {}]
  %s1 = inlined_call_operand.hbm [shape: f32[2,8,32], index: 1, kind: input, shape index: {}]
  %s2 = inlined_call_operand.hbm [shape: f32[2,8,32], index: 2, kind: input, shape index: {}]
  %s3 = inlined_call_operand.hbm [shape: bf16[32,96], index: 3, kind: input, shape index: {}]
  %s4 = inlined_call_operand.vmem [shape: f32[1,96], index: 4, kind: input, shape index: {}]
  %s5 = inlined_call_operand.hbm [shape: bf16[2,8,32], index: 5, kind: output, shape index: {0}]
  %s6 = inlined_call_operand.hbm [shape: bf16[2,8,32], index: 6, kind: output, shape index: {1}]
  %s7 = inlined_call_operand.hbm [shape: bf16[2,8,32], index: 7, kind: output, shape index: {2}]
  %8 = xla_tuple %s5, %s6, %s7
  %s9 = sld [smem:[#allocation0]]
  $region85: #{tpu_custom_call.1} parent=0
    _
  %s11 = ssub.s32 1, %s9
  %s12 = scalar_select 0, %s11, %s9
  $region1: #{tpu_custom_call.1} parent=0
    #allocation2 [shape = 'u8[8192]{0}', space=vmem, size = 0x2000, scoped, tag = 'input window, operand 0']
    #allocation3 [shape = 's32[2]{0}', space=sflag, size = 0x8, scoped, tag = 'scoped memory for tpu_custom_call.1']
    #allocation4 [shape = 's32[2]{0}', space=sflag, size = 0x8, scoped, tag = 'scoped memory for tpu_custom_call.1']
    #allocation5 [shape = 'u8[8192]{0}', space=vmem, size = 0x2000, scoped, tag = 'input window, operand 1']
    #allocation6 [shape = 's32[2]{0}', space=sflag, size = 0x8, scoped, tag = 'scoped memory for tpu_custom_call.1']
    #allocation7 [shape = 'u8[8192]{0}', space=vmem, size = 0x2000, scoped, tag = 'input window, operand 2']
    #allocation8 [shape = 'u8[8192]{0}', space=vmem, size = 0x2000, scoped, tag = 'input window, operand 3, single buffered']
    #allocation9 [shape = 's32[1]{0}', space=sflag, size = 0x4, scoped, tag = 'scoped memory for tpu_custom_call.1']
    #allocation10 [shape = 'u8[4096]{0}', space=vmem, size = 0x1000, scoped, tag = 'output window, operand 0']
    #allocation11 [shape = 'u8[4096]{0}', space=vmem, size = 0x1000, scoped, tag = 'output window, operand 1']
    #allocation12 [shape = 's32[2]{0}', space=sflag, size = 0x8, scoped, tag = 'scoped memory for tpu_custom_call.1']
    #allocation13 [shape = 'u8[4096]{0}', space=vmem, size = 0x1000, scoped, tag = 'output window, operand 2']
    %13 = vsyncpa [#allocation3], 0
    %s14 = scalar_lea.sflag [#allocation3], 1
    %15 = vsyncpa %s14, 0
    %16 = vsyncpa [#allocation6], 0
    %s17 = scalar_lea.sflag [#allocation6], 1
    %18 = vsyncpa %s17, 0
    %19 = vsyncpa [#allocation9], 0
    %20 = vsyncpa [#allocation4], 0
    %s21 = scalar_lea.sflag [#allocation4], 1
    %22 = vsyncpa %s21, 0
    %23 = vsyncpa [#allocation12], 0
    %s24 = scalar_lea.sflag [#allocation12], 1
    %25 = vsyncpa %s24, 0
    loop: start=0, step=1, limit=4
    $region2: #{tpu_custom_call.1} parent=1 // loop_pre_header
      _
    $region3: #{tpu_custom_call.1} parent=1 // loop_header
      %s27 = sphi 0, %s31
      %p28 = scmp.ge.s32.totalorder %s27, 4
      %s34 = sphi 0, %s46
      %s35 = sphi 0, %s42
      %s36 = sphi 0, %s34
      %s37 = sphi 0, %s35
      %s38 = sphi 0, %s36
      %s39 = sphi 0, %s37
      %s51 = sphi 0, %s53
      %s54 = sphi 0, %s51
      %s55 = sphi 0, %s54
      %s71 = sphi 0, %s55
      %s79 = sphi 0, %s81
      %s82 = sphi 0, %s79
      %s83 = sphi 0, %s82
      %s99 = sphi 0, %s83
      %s107 = sphi 0, %s109
      %s110 = sphi 0, %s107
      %s111 = sphi 0, %s110
      %s127 = sphi 0, %s111
      %s131 = sphi 0, %s131
      %s133 = sphi 0, %s131
      %s134 = sphi 0, %s133
      %s148 = sphi 0, %s134
      %s152 = sphi 0, %s152
      %s154 = sphi 0, %s152
      %s155 = sphi 0, %s154
      %s169 = sphi 0, %s155
      %s177 = sphi 0, %s179
      %s180 = sphi 0, %s177
      %s181 = sphi 0, %s180
      %s197 = sphi 0, %s181
      %s205 = sphi 0, %s207
      %s208 = sphi 0, %s205
      %s209 = sphi 0, %s208
      %s225 = sphi 0, %s209
      %s233 = sphi 0, %s235
      %s236 = sphi 0, %s233
      %s237 = sphi 0, %s236
      %s253 = sphi 0, %s237
    $region4: #{tpu_custom_call.1} parent=1 // loop_header_branch
      %30 = sbr.rel (%p28) target = $region8
    $region5: #{tpu_custom_call.1} parent=1 // loop_body
      %s32 = ssub.s32 %s27, 1
      %s33 = ssub.s32 %s27, 2
      %s40 = sadd.s32 1, %s35
      %p41 = scmp.ge.s32.totalorder %s40, 1
      %s42 = scalar_select %p41, 0, %s40
      %s43 = sadd.s32 1, %s34
      %s44 = scalar_select %p41, %s43, %s34
      %p45 = scmp.ge.s32.totalorder %s44, 2
      %s46 = scalar_select %p45, 0, %s44
      %s47 = ssub.s32 %s34, %s46
      %s48 = ssub.s32 %s35, %s42
      %s49 = sor.u32 %s47, %s48
      %p50 = scmp.eq.s32.totalorder %s49, 0
      %s52 = sadd.s32 %s51, 1
      %s53 = scalar_select %p50, %s51, %s52
      %p56 = pneg %p50
      %p57 = scmp.eq.s32.totalorder %s27, 1
      %p58 = por %p56, %p57
      %p59 = scmp.ne.s32.totalorder %s51, %s54
      %p60 = scmp.eq.s32.totalorder %s27, 0
      %p61 = por %p59, %p60
      %p62 = scmp.ne.s32.totalorder %s51, %s54
      %p63 = scmp.eq.s32.totalorder %s32, 1
      %p64 = por %p62, %p63
      %p65 = scmp.ne.s32.totalorder %s54, %s55
      %p66 = scmp.eq.s32.totalorder %s32, 0
      %p67 = por %p65, %p66
      %p68 = scmp.ne.s32.totalorder %s54, %s55
      %p69 = scmp.eq.s32.totalorder %s33, 1
      %p70 = por %p68, %p69
      %p72 = scmp.ne.s32.totalorder %s55, %s71
      %p73 = scmp.eq.s32.totalorder %s33, 0
      %p74 = por %p72, %p73
      %s75 = ssub.s32 %s34, %s46
      %s76 = ssub.s32 %s35, %s42
      %s77 = sor.u32 %s75, %s76
      %p78 = scmp.eq.s32.totalorder %s77, 0
      %s80 = sadd.s32 %s79, 1
      %s81 = scalar_select %p78, %s79, %s80
      %p84 = pneg %p78
      %p85 = scmp.eq.s32.totalorder %s27, 1
      %p86 = por %p84, %p85
      %p87 = scmp.ne.s32.totalorder %s79, %s82
      %p88 = scmp.eq.s32.totalorder %s27, 0
      %p89 = por %p87, %p88
      %p90 = scmp.ne.s32.totalorder %s79, %s82
      %p91 = scmp.eq.s32.totalorder %s32, 1
      %p92 = por %p90, %p91
      %p93 = scmp.ne.s32.totalorder %s82, %s83
      %p94 = scmp.eq.s32.totalorder %s32, 0
      %p95 = por %p93, %p94
      %p96 = scmp.ne.s32.totalorder %s82, %s83
      %p97 = scmp.eq.s32.totalorder %s33, 1
      %p98 = por %p96, %p97
      %p100 = scmp.ne.s32.totalorder %s83, %s99
      %p101 = scmp.eq.s32.totalorder %s33, 0
      %p102 = por %p100, %p101
      %s103 = ssub.s32 %s34, %s46
      %s104 = ssub.s32 %s35, %s42
      %s105 = sor.u32 %s103, %s104
      %p106 = scmp.eq.s32.totalorder %s105, 0
      %s108 = sadd.s32 %s107, 1
      %s109 = scalar_select %p106, %s107, %s108
      %p112 = pneg %p106
      %p113 = scmp.eq.s32.totalorder %s27, 1
      %p114 = por %p112, %p113
      %p115 = scmp.ne.s32.totalorder %s107, %s110
      %p116 = scmp.eq.s32.totalorder %s27, 0
      %p117 = por %p115, %p116
      %p118 = scmp.ne.s32.totalorder %s107, %s110
      %p119 = scmp.eq.s32.totalorder %s32, 1
      %p120 = por %p118, %p119
      %p121 = scmp.ne.s32.totalorder %s110, %s111
      %p122 = scmp.eq.s32.totalorder %s32, 0
      %p123 = por %p121, %p122
      %p124 = scmp.ne.s32.totalorder %s110, %s111
      %p125 = scmp.eq.s32.totalorder %s33, 1
      %p126 = por %p124, %p125
      %p128 = scmp.ne.s32.totalorder %s111, %s127
      %p129 = scmp.eq.s32.totalorder %s33, 0
      %p130 = por %p128, %p129
      %s132 = sadd.s32 %s131, 1
      %p135 = scmp.eq.s32.totalorder %s27, 1
      %p136 = scmp.ne.s32.totalorder %s131, %s133
      %p137 = scmp.eq.s32.totalorder %s27, 0
      %p138 = por %p136, %p137
      %p139 = scmp.ne.s32.totalorder %s131, %s133
      %p140 = scmp.eq.s32.totalorder %s32, 1
      %p141 = por %p139, %p140
      %p142 = scmp.ne.s32.totalorder %s133, %s134
      %p143 = scmp.eq.s32.totalorder %s32, 0
      %p144 = por %p142, %p143
      %p145 = scmp.ne.s32.totalorder %s133, %s134
      %p146 = scmp.eq.s32.totalorder %s33, 1
      %p147 = por %p145, %p146
      %p149 = scmp.ne.s32.totalorder %s134, %s148
      %p150 = scmp.eq.s32.totalorder %s33, 0
      %p151 = por %p149, %p150
      %s153 = sadd.s32 %s152, 1
      %p156 = scmp.eq.s32.totalorder %s27, 1
      %p157 = scmp.ne.s32.totalorder %s152, %s154
      %p158 = scmp.eq.s32.totalorder %s27, 0
      %p159 = por %p157, %p158
      %p160 = scmp.ne.s32.totalorder %s152, %s154
      %p161 = scmp.eq.s32.totalorder %s32, 1
      %p162 = por %p160, %p161
      %p163 = scmp.ne.s32.totalorder %s154, %s155
      %p164 = scmp.eq.s32.totalorder %s32, 0
      %p165 = por %p163, %p164
      %p166 = scmp.ne.s32.totalorder %s154, %s155
      %p167 = scmp.eq.s32.totalorder %s33, 1
      %p168 = por %p166, %p167
      %p170 = scmp.ne.s32.totalorder %s155, %s169
      %p171 = scmp.eq.s32.totalorder %s33, 0
      %p172 = por %p170, %p171
      %s173 = ssub.s32 %s34, %s46
      %s174 = ssub.s32 %s35, %s42
      %s175 = sor.u32 %s173, %s174
      %p176 = scmp.eq.s32.totalorder %s175, 0
      %s178 = sadd.s32 %s177, 1
      %s179 = scalar_select %p176, %s177, %s178
      %p182 = pneg %p176
      %p183 = scmp.eq.s32.totalorder %s27, 1
      %p184 = por %p182, %p183
      %p185 = scmp.ne.s32.totalorder %s177, %s180
      %p186 = scmp.eq.s32.totalorder %s27, 0
      %p187 = por %p185, %p186
      %p188 = scmp.ne.s32.totalorder %s177, %s180
      %p189 = scmp.eq.s32.totalorder %s32, 1
      %p190 = por %p188, %p189
      %p191 = scmp.ne.s32.totalorder %s180, %s181
      %p192 = scmp.eq.s32.totalorder %s32, 0
      %p193 = por %p191, %p192
      %p194 = scmp.ne.s32.totalorder %s180, %s181
      %p195 = scmp.eq.s32.totalorder %s33, 1
      %p196 = por %p194, %p195
      %p198 = scmp.ne.s32.totalorder %s181, %s197
      %p199 = scmp.eq.s32.totalorder %s33, 0
      %p200 = por %p198, %p199
      %s201 = ssub.s32 %s34, %s46
      %s202 = ssub.s32 %s35, %s42
      %s203 = sor.u32 %s201, %s202
      %p204 = scmp.eq.s32.totalorder %s203, 0
      %s206 = sadd.s32 %s205, 1
      %s207 = scalar_select %p204, %s205, %s206
      %p210 = pneg %p204
      %p211 = scmp.eq.s32.totalorder %s27, 1
      %p212 = por %p210, %p211
      %p213 = scmp.ne.s32.totalorder %s205, %s208
      %p214 = scmp.eq.s32.totalorder %s27, 0
      %p215 = por %p213, %p214
      %p216 = scmp.ne.s32.totalorder %s205, %s208
      %p217 = scmp.eq.s32.totalorder %s32, 1
      %p218 = por %p216, %p217
      %p219 = scmp.ne.s32.totalorder %s208, %s209
      %p220 = scmp.eq.s32.totalorder %s32, 0
      %p221 = por %p219, %p220
      %p222 = scmp.ne.s32.totalorder %s208, %s209
      %p223 = scmp.eq.s32.totalorder %s33, 1
      %p224 = por %p222, %p223
      %p226 = scmp.ne.s32.totalorder %s209, %s225
      %p227 = scmp.eq.s32.totalorder %s33, 0
      %p228 = por %p226, %p227
      %s229 = ssub.s32 %s34, %s46
      %s230 = ssub.s32 %s35, %s42
      %s231 = sor.u32 %s229, %s230
      %p232 = scmp.eq.s32.totalorder %s231, 0
      %s234 = sadd.s32 %s233, 1
      %s235 = scalar_select %p232, %s233, %s234
      %p238 = pneg %p232
      %p239 = scmp.eq.s32.totalorder %s27, 1
      %p240 = por %p238, %p239
      %p241 = scmp.ne.s32.totalorder %s233, %s236
      %p242 = scmp.eq.s32.totalorder %s27, 0
      %p243 = por %p241, %p242
      %p244 = scmp.ne.s32.totalorder %s233, %s236
      %p245 = scmp.eq.s32.totalorder %s32, 1
      %p246 = por %p244, %p245
      %p247 = scmp.ne.s32.totalorder %s236, %s237
      %p248 = scmp.eq.s32.totalorder %s32, 0
      %p249 = por %p247, %p248
      %p250 = scmp.ne.s32.totalorder %s236, %s237
      %p251 = scmp.eq.s32.totalorder %s33, 1
      %p252 = por %p250, %p251
      %p254 = scmp.ne.s32.totalorder %s237, %s253
      %p255 = scmp.eq.s32.totalorder %s33, 0
      %p256 = por %p254, %p255
      %p257 = scmp.le.s32.totalorder 1, %s27
      %p258 = scmp.lt.s32.totalorder %s27, 3
      %p259 = pnand %p257, %p258
      %p260 = pneg %p259
      // Predicated region
      $region9: #{tpu_custom_call.1} parent=5 // pred_check
        _
      $region10: #{tpu_custom_call.1} parent=5 // pred_check_branch
        %262 = sbr.rel (%p259) target = $region12
      $region11: #{tpu_custom_call.1} parent=5 // pred_region
        %s263 = ssub.s32 %s27, 1
        // Predicated region
        $region13: #{tpu_custom_call.1} parent=11 // pred_check
          %p264 = pneg %p144
        $region14: #{tpu_custom_call.1} parent=11 // pred_check_branch
          %266 = sbr.rel (%p264) target = $region16
        $region15: #{tpu_custom_call.1} parent=11 // pred_region
          %268 = vsyncadd [#allocation9], 0
          %s269 = sshll.u32 %s3, 4
          %s270 = int_to_ptr.hbm [resolvable:$true] %s269
          %s271 = sshll.u32 [#allocation8], 4
          %s272 = int_to_ptr.vmem [resolvable:$true] %s271
          %277 = dma.hbm_to_vmem [thread:$0]  %s270, 256, %s272, [#allocation9], 64, 64, 4
        $region16: #{tpu_custom_call.1} parent=11 // pred_fallthru
          _
        // Predicated region
        $region17: #{tpu_custom_call.1} parent=11 // pred_check
          %p278 = pneg %p165
        $region18: #{tpu_custom_call.1} parent=11 // pred_check_branch
          %280 = sbr.rel (%p278) target = $region20
        $region19: #{tpu_custom_call.1} parent=11 // pred_region
          _
        $region20: #{tpu_custom_call.1} parent=11 // pred_fallthru
          _
      $region12: #{tpu_custom_call.1} parent=5 // pred_fallthru
        _
      %p281 = scmp.lt.s32.totalorder %s27, 2
      // Predicated region
      $region21: #{tpu_custom_call.1} parent=5 // pred_check
        %p282 = pneg %p281
      $region22: #{tpu_custom_call.1} parent=5 // pred_check_branch
        %284 = sbr.rel (%p282) target = $region24
      $region23: #{tpu_custom_call.1} parent=5 // pred_region
        // Predicated region
        $region25: #{tpu_custom_call.1} parent=23 // pred_check
          %p285 = pneg %p61
        $region26: #{tpu_custom_call.1} parent=23 // pred_check_branch
          %287 = sbr.rel (%p285) target = $region28
        $region27: #{tpu_custom_call.1} parent=23 // pred_region
          %s288 = sand.u32 %s51, 1
          %s289 = scalar_lea.sflag [#allocation3], %s288
          %s290 = sand.u32 %s51, 1
          %s291 = smul.addr %s290, 8
          %s292 = scalar_lea.vmem [#allocation2], %s291
          %294 = vsyncadd %s289, 0
          %s295 = sadd.s32 %s35, %s34
          %s296 = smul.addr %s295, 8
          %s297 = scalar_lea.hbm %s0, %s296
          %s299 = sshll.u32 %s297, 4
          %s300 = int_to_ptr.hbm [resolvable:$true] %s299
          %s301 = sshll.u32 %s292, 4
          %s302 = int_to_ptr.vmem [resolvable:$true] %s301
          %304 = dma.hbm_to_vmem [thread:$0]  %s300, 128, %s302, %s289
        $region28: #{tpu_custom_call.1} parent=23 // pred_fallthru
          _
        // Predicated region
        $region29: #{tpu_custom_call.1} parent=23 // pred_check
          %p305 = pneg %p89
        $region30: #{tpu_custom_call.1} parent=23 // pred_check_branch
          %307 = sbr.rel (%p305) target = $region32
        $region31: #{tpu_custom_call.1} parent=23 // pred_region
          %s308 = sand.u32 %s27, 1
          %s309 = scalar_lea.sflag [#allocation6], %s308
          %s310 = sand.u32 %s79, 1
          %s311 = smul.addr %s310, 8
          %s312 = scalar_lea.vmem [#allocation5], %s311
          %314 = vsyncadd %s309, 0
          %s315 = sadd.s32 %s35, %s34
          %s316 = smul.addr %s315, 8
          %s317 = scalar_lea.hbm %s1, %s316
          %s319 = sshll.u32 %s317, 4
          %s320 = int_to_ptr.hbm [resolvable:$true] %s319
          %s321 = sshll.u32 %s312, 4
          %s322 = int_to_ptr.vmem [resolvable:$true] %s321
          %324 = dma.hbm_to_vmem [thread:$0]  %s320, 128, %s322, %s309
        $region32: #{tpu_custom_call.1} parent=23 // pred_fallthru
          _
        // Predicated region
        $region33: #{tpu_custom_call.1} parent=23 // pred_check
          %p325 = pneg %p117
        $region34: #{tpu_custom_call.1} parent=23 // pred_check_branch
          %327 = sbr.rel (%p325) target = $region36
        $region35: #{tpu_custom_call.1} parent=23 // pred_region
          %s328 = sand.u32 %s27, 1
          %s329 = scalar_lea.sflag [#allocation6], %s328
          %s330 = sand.u32 %s107, 1
          %s331 = smul.addr %s330, 8
          %s332 = scalar_lea.vmem [#allocation7], %s331
          %334 = vsyncadd %s329, 0
          %s335 = sadd.s32 %s35, %s34
          %s336 = smul.addr %s335, 8
          %s337 = scalar_lea.hbm %s2, %s336
          %s339 = sshll.u32 %s337, 4
          %s340 = int_to_ptr.hbm [resolvable:$true] %s339
          %s341 = sshll.u32 %s332, 4
          %s342 = int_to_ptr.vmem [resolvable:$true] %s341
          %344 = dma.hbm_to_vmem [thread:$0]  %s340, 128, %s342, %s329
        $region36: #{tpu_custom_call.1} parent=23 // pred_fallthru
          _
      $region24: #{tpu_custom_call.1} parent=5 // pred_fallthru
        _
      %p345 = scmp.le.s32.totalorder 1, %s27
      %p346 = scmp.lt.s32.totalorder %s27, 3
      %p347 = pnand %p345, %p346
      %p348 = pneg %p347
      // Predicated region
      $region37: #{tpu_custom_call.1} parent=5 // pred_check
        _
      $region38: #{tpu_custom_call.1} parent=5 // pred_check_branch
        %350 = sbr.rel (%p347) target = $region40
      $region39: #{tpu_custom_call.1} parent=5 // pred_region
        %s351 = ssub.s32 %s27, 1
        %s352 = sand.u32 %s54, 1
        %s353 = scalar_lea.sflag [#allocation3], %s352
        %s354 = sand.u32 %s54, 1
        %s355 = smul.addr %s354, 8
        %s356 = scalar_lea.vmem [#allocation2], %s355
        // Predicated region
        $region41: #{tpu_custom_call.1} parent=39 // pred_check
          %p357 = pneg %p67
        $region42: #{tpu_custom_call.1} parent=39 // pred_check_branch
          %359 = sbr.rel (%p357) target = $region44
        $region43: #{tpu_custom_call.1} parent=39 // pred_region
          %361 = dma.done %s353, 128
        $region44: #{tpu_custom_call.1} parent=39 // pred_fallthru
          _
        %s362 = sand.u32 %s32, 1
        %s363 = scalar_lea.sflag [#allocation6], %s362
        %s364 = sand.u32 %s82, 1
        %s365 = smul.addr %s364, 8
        %s366 = scalar_lea.vmem [#allocation5], %s365
        // Predicated region
        $region45: #{tpu_custom_call.1} parent=39 // pred_check
          %p367 = pneg %p95
        $region46: #{tpu_custom_call.1} parent=39 // pred_check_branch
          %369 = sbr.rel (%p367) target = $region48
        $region47: #{tpu_custom_call.1} parent=39 // pred_region
          %371 = dma.done %s363, 128
        $region48: #{tpu_custom_call.1} parent=39 // pred_fallthru
          _
        %s372 = sand.u32 %s32, 1
        %s373 = scalar_lea.sflag [#allocation6], %s372
        %s374 = sand.u32 %s110, 1
        %s375 = smul.addr %s374, 8
        %s376 = scalar_lea.vmem [#allocation7], %s375
        // Predicated region
        $region49: #{tpu_custom_call.1} parent=39 // pred_check
          %p377 = pneg %p123
        $region50: #{tpu_custom_call.1} parent=39 // pred_check_branch
          %379 = sbr.rel (%p377) target = $region52
        $region51: #{tpu_custom_call.1} parent=39 // pred_region
          %381 = dma.done %s373, 128
        $region52: #{tpu_custom_call.1} parent=39 // pred_fallthru
          _
        // Predicated region
        $region53: #{tpu_custom_call.1} parent=39 // pred_check
          %p382 = pneg %p144
        $region54: #{tpu_custom_call.1} parent=39 // pred_check_branch
          %384 = sbr.rel (%p382) target = $region56
        $region55: #{tpu_custom_call.1} parent=39 // pred_region
          %386 = dma.done [#allocation9], 256
        $region56: #{tpu_custom_call.1} parent=39 // pred_fallthru
          _
        %s387 = sand.u32 %s54, 1
        %s388 = scalar_lea.sflag [#allocation3], %s387
        %s389 = sand.u32 %s54, 1
        %s390 = smul.addr %s389, 8
        %s391 = scalar_lea.vmem [#allocation2], %s390
        %p392 = pneg %p67
        %p393 = pneg %p64
        %s394 = sand.u32 %s32, 1
        %s395 = scalar_lea.sflag [#allocation6], %s394
        %s396 = sand.u32 %s82, 1
        %s397 = smul.addr %s396, 8
        %s398 = scalar_lea.vmem [#allocation5], %s397
        %p399 = pneg %p95
        %p400 = pneg %p92
        %s401 = sand.u32 %s32, 1
        %s402 = scalar_lea.sflag [#allocation6], %s401
        %s403 = sand.u32 %s110, 1
        %s404 = smul.addr %s403, 8
        %s405 = scalar_lea.vmem [#allocation7], %s404
        %p406 = pneg %p123
        %p407 = pneg %p120
        %p408 = pneg %p144
        %p409 = pneg %p141
        %p410 = pneg %p165
        %p411 = pneg %p162
        %p412 = pneg %p193
        %p413 = pneg %p190
        %s414 = sand.u32 %s180, 1
        %s415 = scalar_lea.sflag [#allocation4], %s414
        %s416 = sand.u32 %s180, 1
        %s417 = smul.addr %s416, 4
        %s418 = scalar_lea.vmem [#allocation10], %s417
        %p419 = pneg %p221
        %p420 = pneg %p218
        %s421 = sand.u32 %s32, 1
        %s422 = scalar_lea.sflag [#allocation12], %s421
        %s423 = sand.u32 %s208, 1
        %s424 = smul.addr %s423, 4
        %s425 = scalar_lea.vmem [#allocation11], %s424
        %p426 = pneg %p249
        %p427 = pneg %p246
        %s428 = sand.u32 %s32, 1
        %s429 = scalar_lea.sflag [#allocation12], %s428
        %s430 = sand.u32 %s236, 1
        %s431 = smul.addr %s430, 4
        %s432 = scalar_lea.vmem [#allocation13], %s431
        %v434 = vld [vmem:[%s356] sm:$0xff]
        %v435 = vpack.c.bf16 %v434, %v434
        %v436 = vld [vmem:[#allocation8] sm:$0xf]
        %v437 = vld [vmem:[#allocation8 + $0x4] sm:$0xf]
        %v438 = vld [vmem:[#allocation8 + $0x8] sm:$0xf]
        %v439 = vld [vmem:[#allocation8 + $0xc] sm:$0xf]
        %v440 = vld [vmem:[%s4] sm:$0x1]
        %v442 = vperm.slane %v440, 0
        %v448 = vunpack.c.l.b16 %v436
        %v449 = vunpack.c.l.b16 %v437
        %v450 = vunpack.c.l.b16 %v438
        %v451 = vunpack.c.l.b16 %v439
        %v452 = vpack.c.b16 %v449, %v448
        %v453 = vpack.c.b16 %v451, %v450
        %vm456 = vcmask 261120
        %v458 = vsel %vm456, %v435, 0
        %460 = vmatpush.bf16.msra.mxu0 0
        %461 = vmatpush.bf16.msra.mxu0 0
        %462 = vmatpush.bf16.msra.mxu0 0
        %463 = vmatpush.bf16.msra.mxu0 0
        %464 = vmatpush.bf16.msra.mxu0 0
        %465 = vmatpush.bf16.msra.mxu0 0
        %466 = vmatpush.bf16.msra.mxu0 %v453
        %467 = vmatpush.bf16.msra.mxu0 %v452
        %468 = vmatmul.bf16.gmra.mxu0 %v458
        %v469 = vpop.f32.mrf.mxu0
        %v470 = vadd.f32 %v442, %v469
        %v471 = vpop.f32.mrf.mxu0
        %472 = vdwg.mxu0
        %v473 = vpack.c.bf16 %v470, %v470
        %vm474 = vcmask 257024
        %475 = vst.msk [vmem:[%s418] sm:$0xf] %vm474, %v473
        %v476 = vld [vmem:[%s366] sm:$0xff]
        %v477 = vpack.c.bf16 %v476, %v476
        %v478 = vld [vmem:[#allocation8] sm:$0xf]
        %v479 = vld [vmem:[#allocation8 + $0x4] sm:$0xf]
        %v480 = vld [vmem:[#allocation8 + $0x8] sm:$0xf]
        %v481 = vld [vmem:[#allocation8 + $0xc] sm:$0xf]
        %v482 = vld [vmem:[%s4] sm:$0x1]
        %v484 = vperm.slane %v482, 0
        %v489 = vunpack.c.l.b16 %v478
        %v490 = vunpack.c.l.b16 %v479
        %v491 = vunpack.c.l.b16 %v480
        %v492 = vunpack.c.l.b16 %v481
        %v493 = vpack.c.b16 %v490, %v489
        %v494 = vpack.c.b16 %v492, %v491
        %495 = vrot.lane.b32.xlu0 %v493, 96
        %v496 = vpop.permute.xlu0 %495
        %497 = vrot.lane.b32.xlu0 %v494, 96
        %v498 = vpop.permute.xlu0 %497
        %501 = vrot.lane.b32.xlu0 %v484, 96
        %v502 = vpop.permute.xlu0 %501
        %v505 = vsel %vm456, %v477, 0
        %507 = vmatpush.bf16.msra.mxu0 0
        %508 = vmatpush.bf16.msra.mxu0 0
        %509 = vmatpush.bf16.msra.mxu0 0
        %510 = vmatpush.bf16.msra.mxu0 0
        %511 = vmatpush.bf16.msra.mxu0 0
        %512 = vmatpush.bf16.msra.mxu0 0
        %513 = vmatpush.bf16.msra.mxu0 %v498
        %514 = vmatpush.bf16.msra.mxu0 %v496
        %515 = vmatmul.bf16.gmra.mxu0 %v505
        %v516 = vpop.f32.mrf.mxu0
        %v517 = vadd.f32 %v502, %v516
        %v518 = vpop.f32.mrf.mxu0
        %519 = vdwg.mxu0
        %v520 = vpack.c.bf16 %v517, %v517
        %521 = vst.msk [vmem:[%s425] sm:$0xf] %vm474, %v520
        %v522 = vld [vmem:[%s376] sm:$0xff]
        %v523 = vpack.c.bf16 %v522, %v522
        %v524 = vld [vmem:[#allocation8] sm:$0xf]
        %v525 = vld [vmem:[#allocation8 + $0x4] sm:$0xf]
        %v526 = vld [vmem:[#allocation8 + $0x8] sm:$0xf]
        %v527 = vld [vmem:[#allocation8 + $0xc] sm:$0xf]
        %v528 = vld [vmem:[%s4] sm:$0x1]
        %v530 = vperm.slane %v528, 0
        %v535 = vunpack.c.l.b16 %v524
        %v536 = vunpack.c.l.b16 %v525
        %v537 = vunpack.c.l.b16 %v526
        %v538 = vunpack.c.l.b16 %v527
        %v539 = vpack.c.b16 %v536, %v535
        %v540 = vpack.c.b16 %v538, %v537
        %541 = vrot.lane.b32.xlu0 %v539, 64
        %v542 = vpop.permute.xlu0 %541
        %543 = vrot.lane.b32.xlu0 %v540, 64
        %v544 = vpop.permute.xlu0 %543
        %547 = vrot.lane.b32.xlu0 %v530, 64
        %v548 = vpop.permute.xlu0 %547
        %v551 = vsel %vm456, %v523, 0
        %553 = vmatpush.bf16.msra.mxu0 0
        %554 = vmatpush.bf16.msra.mxu0 0
        %555 = vmatpush.bf16.msra.mxu0 0
        %556 = vmatpush.bf16.msra.mxu0 0
        %557 = vmatpush.bf16.msra.mxu0 0
        %558 = vmatpush.bf16.msra.mxu0 0
        %559 = vmatpush.bf16.msra.mxu0 %v544
        %560 = vmatpush.bf16.msra.mxu0 %v542
        %561 = vmatmul.bf16.gmra.mxu0 %v551
        %v562 = vpop.f32.mrf.mxu0
        %v563 = vadd.f32 %v548, %v562
        %v564 = vpop.f32.mrf.mxu0
        %565 = vdwg.mxu0
        %v566 = vpack.c.bf16 %v563, %v563
        %567 = vst.msk [vmem:[%s432] sm:$0xf] %vm474, %v566
        %s568 = sand.u32 %s180, 1
        %s569 = scalar_lea.sflag [#allocation4], %s568
        %s570 = sand.u32 %s180, 1
        %s571 = smul.addr %s570, 4
        %s572 = scalar_lea.vmem [#allocation10], %s571
        %s573 = sand.u32 %s32, 1
        %s574 = scalar_lea.sflag [#allocation12], %s573
        %s575 = sand.u32 %s208, 1
        %s576 = smul.addr %s575, 4
        %s577 = scalar_lea.vmem [#allocation11], %s576
        %s578 = sand.u32 %s32, 1
        %s579 = scalar_lea.sflag [#allocation12], %s578
        %s580 = sand.u32 %s236, 1
        %s581 = smul.addr %s580, 4
        %s582 = scalar_lea.vmem [#allocation13], %s581
        // Predicated region
        $region57: #{tpu_custom_call.1} parent=39 // pred_check
          %p583 = pneg %p190
        $region58: #{tpu_custom_call.1} parent=39 // pred_check_branch
          %585 = sbr.rel (%p583) target = $region60
        $region59: #{tpu_custom_call.1} parent=39 // pred_region
          %587 = vsyncadd %s569, 0
          %s588 = sadd.s32 %s37, %s36
          %s589 = smul.addr %s588, 4
          %s590 = scalar_lea.hbm %s5, %s589
          %s592 = sshll.u32 %s572, 4
          %s593 = int_to_ptr.vmem [resolvable:$true] %s592
          %s594 = sshll.u32 %s590, 4
          %s595 = int_to_ptr.hbm [resolvable:$true] %s594
          %597 = dma.vmem_to_hbm [thread:$0]  %s593, 64, %s595, %s569
        $region60: #{tpu_custom_call.1} parent=39 // pred_fallthru
          _
        // Predicated region
        $region61: #{tpu_custom_call.1} parent=39 // pred_check
          %p598 = pneg %p218
        $region62: #{tpu_custom_call.1} parent=39 // pred_check_branch
          %600 = sbr.rel (%p598) target = $region64
        $region63: #{tpu_custom_call.1} parent=39 // pred_region
          %602 = vsyncadd %s574, 0
          %s603 = sadd.s32 %s37, %s36
          %s604 = smul.addr %s603, 4
          %s605 = scalar_lea.hbm %s6, %s604
          %s607 = sshll.u32 %s577, 4
          %s608 = int_to_ptr.vmem [resolvable:$true] %s607
          %s609 = sshll.u32 %s605, 4
          %s610 = int_to_ptr.hbm [resolvable:$true] %s609
          %612 = dma.vmem_to_hbm [thread:$0]  %s608, 64, %s610, %s574
        $region64: #{tpu_custom_call.1} parent=39 // pred_fallthru
          _
        // Predicated region
        $region65: #{tpu_custom_call.1} parent=39 // pred_check
          %p613 = pneg %p246
        $region66: #{tpu_custom_call.1} parent=39 // pred_check_branch
          %615 = sbr.rel (%p613) target = $region68
        $region67: #{tpu_custom_call.1} parent=39 // pred_region
          %617 = vsyncadd %s579, 0
          %s618 = sadd.s32 %s37, %s36
          %s619 = smul.addr %s618, 4
          %s620 = scalar_lea.hbm %s7, %s619
          %s622 = sshll.u32 %s582, 4
          %s623 = int_to_ptr.vmem [resolvable:$true] %s622
          %s624 = sshll.u32 %s620, 4
          %s625 = int_to_ptr.hbm [resolvable:$true] %s624
          %627 = dma.vmem_to_hbm [thread:$0]  %s623, 64, %s625, %s579
        $region68: #{tpu_custom_call.1} parent=39 // pred_fallthru
          _
      $region40: #{tpu_custom_call.1} parent=5 // pred_fallthru
        _
      %p628 = scmp.le.s32.totalorder 2, %s27
      // Predicated region
      $region69: #{tpu_custom_call.1} parent=5 // pred_check
        %p629 = pneg %p628
      $region70: #{tpu_custom_call.1} parent=5 // pred_check_branch
        %631 = sbr.rel (%p629) target = $region72
      $region71: #{tpu_custom_call.1} parent=5 // pred_region
        %s632 = ssub.s32 %s27, 2
        // Predicated region
        $region73: #{tpu_custom_call.1} parent=71 // pred_check
          %p633 = pneg %p196
        $region74: #{tpu_custom_call.1} parent=71 // pred_check_branch
          %635 = sbr.rel (%p633) target = $region76
        $region75: #{tpu_custom_call.1} parent=71 // pred_region
          %s636 = sand.u32 %s181, 1
          %s637 = scalar_lea.sflag [#allocation4], %s636
          %s638 = sand.u32 %s181, 1
          %s639 = smul.addr %s638, 4
          %s640 = scalar_lea.vmem [#allocation10], %s639
          %642 = dma.done %s637, 64
        $region76: #{tpu_custom_call.1} parent=71 // pred_fallthru
          _
        // Predicated region
        $region77: #{tpu_custom_call.1} parent=71 // pred_check
          %p643 = pneg %p224
        $region78: #{tpu_custom_call.1} parent=71 // pred_check_branch
          %645 = sbr.rel (%p643) target = $region80
        $region79: #{tpu_custom_call.1} parent=71 // pred_region
          %s646 = sand.u32 %s33, 1
          %s647 = scalar_lea.sflag [#allocation12], %s646
          %s648 = sand.u32 %s209, 1
          %s649 = smul.addr %s648, 4
          %s650 = scalar_lea.vmem [#allocation11], %s649
          %652 = dma.done %s647, 64
        $region80: #{tpu_custom_call.1} parent=71 // pred_fallthru
          _
        // Predicated region
        $region81: #{tpu_custom_call.1} parent=71 // pred_check
          %p653 = pneg %p252
        $region82: #{tpu_custom_call.1} parent=71 // pred_check_branch
          %655 = sbr.rel (%p653) target = $region84
        $region83: #{tpu_custom_call.1} parent=71 // pred_region
          %s656 = sand.u32 %s33, 1
          %s657 = scalar_lea.sflag [#allocation12], %s656
          %s658 = sand.u32 %s237, 1
          %s659 = smul.addr %s658, 4
          %s660 = scalar_lea.vmem [#allocation13], %s659
          %662 = dma.done %s657, 64
        $region84: #{tpu_custom_call.1} parent=71 // pred_fallthru
          _
      $region72: #{tpu_custom_call.1} parent=5 // pred_fallthru
        _
    $region6: #{tpu_custom_call.1} parent=1 // loop_footer
      %s31 = sadd.s32 1, %s27
    $region7: #{tpu_custom_call.1} parent=1 // loop_footer_branch
      %26 = sbr.rel target = $region3
    $region8: #{tpu_custom_call.1} parent=1 // loop_exit
      _
    %663 = vsyncpa [#allocation3], 1
    %s664 = scalar_lea.sflag [#allocation3], 1
    %665 = vsyncpa %s664, 1
    %666 = vsyncpa [#allocation6], 1
    %s667 = scalar_lea.sflag [#allocation6], 1
    %668 = vsyncpa %s667, 1
    %669 = vsyncpa [#allocation9], 1
    %670 = vsyncpa [#allocation4], 1
    %s671 = scalar_lea.sflag [#allocation4], 1
    %672 = vsyncpa %s671, 1
    %673 = vsyncpa [#allocation12], 1
    %s674 = scalar_lea.sflag [#allocation12], 1
    %675 = vsyncpa %s674, 1

</llo_original>
